<compile_context>
chip_gen: v6e
topology: v6e:2x2x1
jax: 0.10.0
libtpu: 0.0.40
codegen_flags: <defaults>
</compile_context>

<pallas_src>
import functools

import jax
import jax.numpy as jnp
from jax.experimental import pallas as pl
from jax.experimental.pallas import tpu as pltpu


def _classifier_kernel(ids_ref, mask_ref, inv_ref, emb_hbm, w_ref, b_ref,
                       out_ref, ebuf, sem, acc):
    """
    ids_ref : (num_b_tiles*num_chunks*TB*TS,) int32 SMEM (scalar prefetch)
              pre-clamped token ids, step-major: ((i*num_chunks + c)*TB*TS) + b*TS + t
    mask_ref: (num_chunks, TB, TB*TS) VMEM      block-diagonal pooling weights
    inv_ref : (TB, 1) f32 VMEM                  1 / max(sum(mask), 1) per batch row
    emb_hbm : (V, H_pad) HBM (pl.ANY)           embedding table (never fully loaded)
    w_ref   : (H_pad, C_pad) VMEM               classifier weight (zero padded)
    b_ref   : (1, C_pad) f32 VMEM               classifier bias (zero padded)
    out_ref : (TB, C_pad) f32 VMEM              logits block for this batch tile
    ebuf    : (2, TB*TS, H_pad) VMEM scratch    double-buffered gathered rows
    sem     : (2,) DMA semaphores               one semaphore per buffer slot
    acc     : (TB, H_pad) f32 VMEM scratch      masked-sum accumulator
    """
    i = pl.program_id(0)
    num_chunks, TB, rows_per_step = mask_ref.shape       # rows_per_step == TB*TS

    def issue_gather(c, slot):
        # Scalar-driven HBM row gather for one whole (batch tile x seq chunk).
        base = (i * num_chunks + c) * rows_per_step

        @pl.loop(0, rows_per_step)
        def _(j):
            tok = ids_ref[base + j]                       # pre-clamped in the wrapper
            pltpu.make_async_copy(
                emb_hbm.at[pl.ds(tok, 1), :],
                ebuf.at[slot, pl.ds(j, 1), :],
                sem.at[slot],                             # every row signals the slot sem
            ).start()

    def wait_gather(slot):
        # DMA semaphores count bytes: one bulk wait sized to the whole slot covers all
        # rows_per_step row copies issued against this slot (src is shape-only).
        pltpu.make_async_copy(ebuf.at[1 - slot], ebuf.at[slot], sem.at[slot]).wait()

    issue_gather(0, 0)                                    # prime the DMA pipeline
    acc[...] = jnp.zeros_like(acc)

    @pl.loop(0, num_chunks)
    def _(c):
        slot = c % 2

        @pl.when(c + 1 < num_chunks)                      # prefetch BEFORE waiting: the
        def _():                                          # other slot's compute already
            issue_gather(c + 1, 1 - slot)                 # finished, and scalar id reads
                                                          # stay ahead of the DMA wait.
        wait_gather(slot)

        # Masked pooling as a full-tile MXU contraction:
        #   (TB, TB*TS) block-diagonal mask @ (TB*TS, H_pad) gathered rows -> (TB, H_pad)
        acc[...] += jnp.dot(mask_ref[c], ebuf[slot],
                            preferred_element_type=jnp.float32)

    # Finalize: masked mean (reciprocal precomputed in the wrapper) + classifier head.
    # (TB, C_pad) output is lane-dense -> unmasked vector stores.
    pooled = acc[...] * inv_ref[...]                      # (TB, H_pad) * (TB, 1)
    logits = jnp.dot(pooled.astype(w_ref.dtype), w_ref[...],
                     preferred_element_type=jnp.float32) + b_ref[...]
    out_ref[...] = logits.astype(out_ref.dtype)


def _round_up(x, m):
    return (x + m - 1) // m * m


@functools.partial(jax.jit, static_argnames=("batch_tile", "seq_tile", "param_dtype"))
def pallas_classifier_forward(input_ids, attention_mask, emb_table, w_cls, b_cls,
                              *, batch_tile=8, seq_tile=64, param_dtype=jnp.float32):
    B, S = input_ids.shape
    V, H = emb_table.shape
    C = w_cls.shape[1]

    # TB multiple of 8 (sublanes); TS multiple of 16 so TB*TS is a multiple of 128
    # (lane-dense block-diagonal mask, MXU-friendly K).  TS shrinks for tiny sequences.
    TB = _round_up(min(batch_tile, _round_up(B, 8)), 8)
    TS = _round_up(min(seq_tile, _round_up(S, 16)), 16)
    B_pad = _round_up(B, TB)
    S_pad = _round_up(S, TS)
    H_pad = _round_up(H, 128)          # lane-dense gathered rows / MXU contraction
    C_pad = _round_up(C, 128)          # lane-dense logits -> unmasked vector stores
    num_chunks = S_pad // TS
    num_b_tiles = B_pad // TB          # >1 tile for larger batches -> both TCs on v7x
    rows_per_step = TB * TS

    # ---- wrapper-side layout plumbing (padded rows/positions carry mask == 0) ----
    ids = jnp.zeros((B_pad, S_pad), jnp.int32).at[:B, :S].set(input_ids.astype(jnp.int32))
    ids = jnp.clip(ids, 0, V - 1)      # clamp OOB ids here, not per-token in the kernel
    # Step-major 1D id layout: offset ((i*num_chunks + c)*TB*TS) + b*TS + t.
    ids_lin = ids.reshape(num_b_tiles, TB, num_chunks, TS).transpose(0, 2, 1, 3).reshape(-1)

    mask = jnp.zeros((B_pad, S_pad), jnp.float32).at[:B, :S].set(
        attention_mask.astype(jnp.float32))
    # Block-diagonal pooling weights: bd[i, c, b, b*TS + t] = mask[i*TB + b, c*TS + t].
    m4 = mask.reshape(num_b_tiles, TB, num_chunks, TS)
    mask_bd = jnp.einsum("ibct,bk->icbkt", m4, jnp.eye(TB, dtype=jnp.float32))
    mask_bd = mask_bd.reshape(num_b_tiles, num_chunks, TB, rows_per_step).astype(param_dtype)

    # Mean denominator precomputed and inverted outside the kernel.
    inv_denom = (1.0 / jnp.maximum(mask.sum(axis=1, keepdims=True), 1.0)).astype(jnp.float32)

    # param_dtype=jnp.bfloat16 halves the dominant HBM gather traffic on v5e/v6e/v7x
    # alike (rows/W feed the MXU only; accumulation stays f32 via preferred_element_type).
    emb_p = jnp.zeros((V, H_pad), param_dtype).at[:, :H].set(emb_table.astype(param_dtype))
    w_p = jnp.zeros((H_pad, C_pad), param_dtype).at[:H, :C].set(w_cls.astype(param_dtype))
    b_p = jnp.zeros((1, C_pad), jnp.float32).at[0, :C].set(b_cls.astype(jnp.float32))

    grid_spec = pltpu.PrefetchScalarGridSpec(
        num_scalar_prefetch=1,                     # ids -> SMEM, drive the DMA gather
        grid=(num_b_tiles,),
        in_specs=[
            pl.BlockSpec((pl.Squeezed(), num_chunks, TB, rows_per_step),
                         lambda i, _ids: (i, 0, 0, 0)),           # block-diag mask
            pl.BlockSpec((TB, 1), lambda i, _ids: (i, 0)),        # 1 / denominator
            pl.BlockSpec(memory_space=pl.ANY),                    # emb table stays in HBM
            pl.BlockSpec((H_pad, C_pad), lambda i, _ids: (0, 0)),  # classifier W (resident)
            pl.BlockSpec((1, C_pad), lambda i, _ids: (0, 0)),      # classifier b
        ],
        out_specs=pl.BlockSpec((TB, C_pad), lambda i, _ids: (i, 0)),
        scratch_shapes=[
            pltpu.VMEM((2, rows_per_step, H_pad), param_dtype),   # gathered rows (dbl buf)
            pltpu.SemaphoreType.DMA((2,)),                        # one sem per slot
            pltpu.VMEM((TB, H_pad), jnp.float32),                 # masked-sum accumulator
        ],
    )

    logits_padded = pl.pallas_call(
        _classifier_kernel,
        out_shape=jax.ShapeDtypeStruct((B_pad, C_pad), jnp.float32),
        grid_spec=grid_spec,
        compiler_params=pltpu.CompilerParams(
            dimension_semantics=("parallel",),     # batch tiles split across TCs on v7x
            vmem_limit_bytes=32 * 1024 * 1024,     # above v5e's 16 MiB scoped default,
        ),                                         # within v7x's 64 MiB physical VMEM
    )(ids_lin, mask_bd, inv_denom, emb_p, w_p, b_p)

    return logits_padded[:B, :C]


class BaseModel:
    """JAX analogue of the PyTorch BaseModel wrapper: returns only the logits."""

    def __init__(self, params, *, param_dtype=jnp.float32):
        self.emb_table, self.w_cls, self.b_cls = params
        self.param_dtype = param_dtype

    def forward(self, input_ids, attention_mask):
        # Equivalent of `output = self.model(input_ids, attention_mask); return output.logits`
        return pallas_classifier_forward(
            input_ids, attention_mask, self.emb_table, self.w_cls, self.b_cls,
            param_dtype=self.param_dtype)


def _reference_forward(input_ids, attention_mask, emb_table, w_cls, b_cls):
    emb = emb_table[input_ids]                              # (B, S, H)
    mask = attention_mask.astype(jnp.float32)
    masked = emb * mask[:, :, None]
    pooled = masked.sum(axis=1) / jnp.maximum(mask.sum(axis=1, keepdims=True), 1.0)
    return pooled @ w_cls + b_cls[None, :]


if __name__ == "__main__":
    B, S, V, H, C = 2, 8, 64, 32, 4

    key = jax.random.PRNGKey(0)
    k_ids, k_emb, k_w, k_b = jax.random.split(key, 4)

    input_ids = jax.random.randint(k_ids, (B, S), 0, V, dtype=jnp.int32)
    # Simple deterministic attention mask: last 2 tokens of sample 1 are padding.
    attention_mask = jnp.ones((B, S), dtype=jnp.float32)
    attention_mask = attention_mask.at[1, S - 2:].set(0.0)

    emb_table = jax.random.normal(k_emb, (V, H), dtype=jnp.float32) * 0.02
    w_cls = jax.random.normal(k_w, (H, C), dtype=jnp.float32) * 0.02
    b_cls = jax.random.normal(k_b, (C,), dtype=jnp.float32) * 0.01

    model = BaseModel((emb_table, w_cls, b_cls))
    logits = model.forward(input_ids, attention_mask)
    logits = jax.block_until_ready(logits)

    ref = _reference_forward(input_ids, attention_mask, emb_table, w_cls, b_cls)
    assert logits.shape == (B, C)
    assert jnp.allclose(logits, ref, atol=1e-5, rtol=1e-5)

    print("KERNEL_OK")
</pallas_src>

<mosaic_0001>
module attributes {stable_mosaic.version = 11 : i64} {
  func.func @_classifier_kernel(%arg0: i32, %arg1: memref<128xi32, #tpu.memory_space<smem>>, %arg2: memref<1x1x8x128xf32, #tpu.memory_space<vmem>>, %arg3: memref<8x1xf32, #tpu.memory_space<vmem>>, %arg4: memref<64x128xf32, #tpu.memory_space<any>>, %arg5: memref<128x128xf32, #tpu.memory_space<vmem>>, %arg6: memref<1x128xf32, #tpu.memory_space<vmem>>, %arg7: memref<8x128xf32, #tpu.memory_space<vmem>>, %arg8: memref<2x128x128xf32, #tpu.memory_space<vmem>>, %arg9: memref<2x!tpu.dma_semaphore, #tpu.memory_space<semaphore_mem>>, %arg10: memref<8x128xf32, #tpu.memory_space<vmem>>) attributes {dimension_semantics = [#tpu.dimension_semantics<parallel>], iteration_bounds = array<i64: 1>, scalar_prefetch = 1 : i64, scratch_operands = 3 : i64, tpu.core_type = #tpu.core_type<tc>, window_params = [{transform_indices = @transform_0, window_bounds = array<i64: 1, 1, 8, 128>}, {transform_indices = @transform_1, window_bounds = array<i64: 8, 1>}, {}, {pipeline_mode = #tpu.pipeline_mode<synchronous>, transform_indices = @transform_3, window_bounds = array<i64: 128, 128>}, {pipeline_mode = #tpu.pipeline_mode<synchronous>, transform_indices = @transform_4, window_bounds = array<i64: 1, 128>}, {transform_indices = @transform_5, window_bounds = array<i64: 8, 128>}]} {
    %c1_i32 = arith.constant 1 : i32
    %0 = arith.muli %arg0, %c1_i32 : i32
    %c0_i32 = arith.constant 0 : i32
    %1 = arith.addi %0, %c0_i32 : i32
    %c128_i32 = arith.constant 128 : i32
    %2 = arith.muli %1, %c128_i32 : i32
    %c0_i32_0 = arith.constant 0 : i32
    %c128_i32_1 = arith.constant 128 : i32
    %3 = arith.addi %c0_i32_0, %c128_i32_1 : i32
    %c1_i32_2 = arith.constant 1 : i32
    scf.for %arg11 = %c0_i32_0 to %3 step %c1_i32_2  : i32 {
      %c1_i32_43 = arith.constant 1 : i32
      %49 = arith.muli %arg11, %c1_i32_43 : i32
      %c0_i32_44 = arith.constant 0 : i32
      %50 = arith.addi %c0_i32_44, %49 : i32
      %51 = arith.addi %2, %50 : i32
      %52 = arith.index_cast %51 : i32 to index
      %53 = memref.load %arg1[%52] : memref<128xi32, #tpu.memory_space<smem>>
      %c0_i32_45 = arith.constant 0 : i32
      %c0_i32_46 = arith.constant 0 : i32
      %c0_i32_47 = arith.constant 0 : i32
      %54 = tpu.memref_slice %arg4[%53, %c0_i32_47] : memref<64x128xf32, #tpu.memory_space<any>> -> memref<1x128xf32, #tpu.memory_space<any>>
      %c0_i32_48 = arith.constant 0 : i32
      %55 = tpu.memref_slice %arg8[%c0_i32_45, %50, %c0_i32_48] : memref<2x128x128xf32, #tpu.memory_space<vmem>> -> memref<1x1x128xf32, #tpu.memory_space<vmem>>
      %56 = tpu.memref_squeeze %55 : memref<1x1x128xf32, #tpu.memory_space<vmem>> -> memref<1x128xf32, #tpu.memory_space<vmem>>
      %57 = tpu.memref_slice %arg9[%c0_i32_46] : memref<2x!tpu.dma_semaphore, #tpu.memory_space<semaphore_mem>> -> memref<1x!tpu.dma_semaphore, #tpu.memory_space<semaphore_mem>>
      %58 = tpu.memref_squeeze %57 : memref<1x!tpu.dma_semaphore, #tpu.memory_space<semaphore_mem>> -> memref<!tpu.dma_semaphore, #tpu.memory_space<semaphore_mem>>
      tpu.enqueue_dma source(%54 : memref<1x128xf32, #tpu.memory_space<any>>) target(%56 : memref<1x128xf32, #tpu.memory_space<vmem>>) target_semaphore(%58 : memref<!tpu.dma_semaphore, #tpu.memory_space<semaphore_mem>>)
    }
    %c128_i32_3 = arith.constant 128 : i32
    %cst = arith.constant 0.000000e+00 : f32
    %4 = vector.broadcast %cst : f32 to vector<8x128xf32>
    %c0 = arith.constant 0 : index
    %c0_4 = arith.constant 0 : index
    %5 = vector.load %arg10[%c0, %c0_4] : memref<8x128xf32, #tpu.memory_space<vmem>>, vector<8x128xf32>
    tpu.vector_store %arg10[%c0, %c0_4], %4 {strides = array<i32>} : memref<8x128xf32, #tpu.memory_space<vmem>>, vector<8x128xf32>,
    %c0_i32_5 = arith.constant 0 : i32
    %c1_i32_6 = arith.constant 1 : i32
    %6 = arith.muli %c0_i32_5, %c1_i32_6 : i32
    %c0_i32_7 = arith.constant 0 : i32
    %7 = arith.addi %c0_i32_7, %6 : i32
    %c2_i32 = arith.constant 2 : i32
    %c0_i32_8 = arith.constant 0 : i32
    %8 = arith.cmpi eq, %c2_i32, %c0_i32_8 : i32
    %c1_i32_9 = arith.constant 1 : i32
    %9 = arith.select %8, %c1_i32_9, %c2_i32 : i32
    %10 = arith.remsi %7, %9 : i32
    %c0_i32_10 = arith.constant 0 : i32
    %11 = arith.cmpi ne, %10, %c0_i32_10 : i32
    %c0_i32_11 = arith.constant 0 : i32
    %12 = arith.cmpi slt, %10, %c0_i32_11 : i32
    %c0_i32_12 = arith.constant 0 : i32
    %13 = arith.cmpi slt, %9, %c0_i32_12 : i32
    %14 = arith.xori %12, %13 : i1
    %15 = arith.andi %14, %11 : i1
    %16 = arith.addi %10, %9 : i32
    %17 = arith.select %15, %16, %10 : i32
    %c1_i32_13 = arith.constant 1 : i32
    %18 = arith.addi %7, %c1_i32_13 : i32
    %c1_i32_14 = arith.constant 1 : i32
    %19 = arith.cmpi slt, %18, %c1_i32_14 : i32
    %20 = arith.extui %19 : i1 to i32
    %c0_i32_15 = arith.constant 0 : i32
    %21 = arith.cmpi ne, %20, %c0_i32_15 : i32
    scf.if %21 {
      %c1_i32_43 = arith.constant 1 : i32
      %49 = arith.addi %7, %c1_i32_43 : i32
      %c1_i32_44 = arith.constant 1 : i32
      %50 = arith.subi %c1_i32_44, %17 : i32
      %c1_i32_45 = arith.constant 1 : i32
      %51 = arith.muli %arg0, %c1_i32_45 : i32
      %52 = arith.addi %51, %49 : i32
      %c128_i32_46 = arith.constant 128 : i32
      %53 = arith.muli %52, %c128_i32_46 : i32
      %c0_i32_47 = arith.constant 0 : i32
      %c128_i32_48 = arith.constant 128 : i32
      %54 = arith.addi %c0_i32_47, %c128_i32_48 : i32
      %c1_i32_49 = arith.constant 1 : i32
      scf.for %arg11 = %c0_i32_47 to %54 step %c1_i32_49  : i32 {
        %c1_i32_51 = arith.constant 1 : i32
        %55 = arith.muli %arg11, %c1_i32_51 : i32
        %c0_i32_52 = arith.constant 0 : i32
        %56 = arith.addi %c0_i32_52, %55 : i32
        %57 = arith.addi %53, %56 : i32
        %58 = arith.index_cast %57 : i32 to index
        %59 = memref.load %arg1[%58] : memref<128xi32, #tpu.memory_space<smem>>
        %c0_i32_53 = arith.constant 0 : i32
        %60 = tpu.memref_slice %arg4[%59, %c0_i32_53] : memref<64x128xf32, #tpu.memory_space<any>> -> memref<1x128xf32, #tpu.memory_space<any>>
        %c0_i32_54 = arith.constant 0 : i32
        %61 = tpu.memref_slice %arg8[%50, %56, %c0_i32_54] : memref<2x128x128xf32, #tpu.memory_space<vmem>> -> memref<1x1x128xf32, #tpu.memory_space<vmem>>
        %62 = tpu.memref_squeeze %61 : memref<1x1x128xf32, #tpu.memory_space<vmem>> -> memref<1x128xf32, #tpu.memory_space<vmem>>
        %63 = tpu.memref_slice %arg9[%50] : memref<2x!tpu.dma_semaphore, #tpu.memory_space<semaphore_mem>> -> memref<1x!tpu.dma_semaphore, #tpu.memory_space<semaphore_mem>>
        %64 = tpu.memref_squeeze %63 : memref<1x!tpu.dma_semaphore, #tpu.memory_space<semaphore_mem>> -> memref<!tpu.dma_semaphore, #tpu.memory_space<semaphore_mem>>
        tpu.enqueue_dma source(%60 : memref<1x128xf32, #tpu.memory_space<any>>) target(%62 : memref<1x128xf32, #tpu.memory_space<vmem>>) target_semaphore(%64 : memref<!tpu.dma_semaphore, #tpu.memory_space<semaphore_mem>>)
      }
      %c128_i32_50 = arith.constant 128 : i32
    } else {
    }
    %c1_i32_16 = arith.constant 1 : i32
    %22 = arith.subi %c1_i32_16, %17 : i32
    %c0_i32_17 = arith.constant 0 : i32
    %c0_i32_18 = arith.constant 0 : i32
    %23 = tpu.memref_slice %arg8[%22, %c0_i32_17, %c0_i32_18] : memref<2x128x128xf32, #tpu.memory_space<vmem>> -> memref<1x128x128xf32, #tpu.memory_space<vmem>>
    %24 = tpu.memref_squeeze %23 : memref<1x128x128xf32, #tpu.memory_space<vmem>> -> memref<128x128xf32, #tpu.memory_space<vmem>>
    %c0_i32_19 = arith.constant 0 : i32
    %c0_i32_20 = arith.constant 0 : i32
    %25 = tpu.memref_slice %arg8[%17, %c0_i32_19, %c0_i32_20] : memref<2x128x128xf32, #tpu.memory_space<vmem>> -> memref<1x128x128xf32, #tpu.memory_space<vmem>>
    %26 = tpu.memref_squeeze %25 : memref<1x128x128xf32, #tpu.memory_space<vmem>> -> memref<128x128xf32, #tpu.memory_space<vmem>>
    %27 = tpu.memref_slice %arg9[%17] : memref<2x!tpu.dma_semaphore, #tpu.memory_space<semaphore_mem>> -> memref<1x!tpu.dma_semaphore, #tpu.memory_space<semaphore_mem>>
    %28 = tpu.memref_squeeze %27 : memref<1x!tpu.dma_semaphore, #tpu.memory_space<semaphore_mem>> -> memref<!tpu.dma_semaphore, #tpu.memory_space<semaphore_mem>>
    tpu.wait_dma2 semaphore(%28 : memref<!tpu.dma_semaphore, #tpu.memory_space<semaphore_mem>>) src(%24 : memref<128x128xf32, #tpu.memory_space<vmem>>) dst(%26 : memref<128x128xf32, #tpu.memory_space<vmem>>)
    %c0_21 = arith.constant 0 : index
    %c0_22 = arith.constant 0 : index
    %29 = vector.load %arg10[%c0_21, %c0_22] : memref<8x128xf32, #tpu.memory_space<vmem>>, vector<8x128xf32>
    %c0_23 = arith.constant 0 : index
    %30 = arith.index_cast %7 : i32 to index
    %c0_24 = arith.constant 0 : index
    %c0_25 = arith.constant 0 : index
    %31 = vector.load %arg2[%c0_23, %30, %c0_24, %c0_25] : memref<1x1x8x128xf32, #tpu.memory_space<vmem>>, vector<1x1x8x128xf32>
    %32 = vector.shape_cast %31 : vector<1x1x8x128xf32> to vector<8x128xf32>
    %33 = arith.index_cast %17 : i32 to index
    %c0_26 = arith.constant 0 : index
    %c0_27 = arith.constant 0 : index
    %34 = vector.load %arg8[%33, %c0_26, %c0_27] : memref<2x128x128xf32, #tpu.memory_space<vmem>>, vector<1x128x128xf32>
    %35 = vector.shape_cast %34 : vector<1x128x128xf32> to vector<128x128xf32>
    %cst_28 = arith.constant dense<0.000000e+00> : vector<8x128xf32>
    %36 = tpu.matmul %32, %35, %cst_28 {dimension_numbers = #tpu.dot_dimension_numbers<[1], [0], [0], [1], [0, 0, 1, 1], [], []>} : vector<8x128xf32>, vector<128x128xf32>, vector<8x128xf32> -> vector<8x128xf32>
    %37 = arith.addf %29, %36 : vector<8x128xf32>
    %c0_29 = arith.constant 0 : index
    %c0_30 = arith.constant 0 : index
    %38 = vector.load %arg10[%c0_29, %c0_30] : memref<8x128xf32, #tpu.memory_space<vmem>>, vector<8x128xf32>
    tpu.vector_store %arg10[%c0_29, %c0_30], %37 {strides = array<i32>} : memref<8x128xf32, #tpu.memory_space<vmem>>, vector<8x128xf32>,
    %c1_i32_31 = arith.constant 1 : i32
    %c0_32 = arith.constant 0 : index
    %c0_33 = arith.constant 0 : index
    %39 = vector.load %arg10[%c0_32, %c0_33] : memref<8x128xf32, #tpu.memory_space<vmem>>, vector<8x128xf32>
    %c0_34 = arith.constant 0 : index
    %c0_35 = arith.constant 0 : index
    %40 = vector.load %arg3[%c0_34, %c0_35] : memref<8x1xf32, #tpu.memory_space<vmem>>, vector<8x1xf32>
    %41 = vector.broadcast %40 : vector<8x1xf32> to vector<8x128xf32>
    %42 = arith.mulf %39, %41 : vector<8x128xf32>
    %c0_36 = arith.constant 0 : index
    %c0_37 = arith.constant 0 : index
    %43 = vector.load %arg5[%c0_36, %c0_37] : memref<128x128xf32, #tpu.memory_space<vmem>>, vector<128x128xf32>
    %cst_38 = arith.constant dense<0.000000e+00> : vector<8x128xf32>
    %44 = tpu.matmul %42, %43, %cst_38 {dimension_numbers = #tpu.dot_dimension_numbers<[1], [0], [0], [1], [0, 0, 1, 1], [], []>} : vector<8x128xf32>, vector<128x128xf32>, vector<8x128xf32> -> vector<8x128xf32>
    %c0_39 = arith.constant 0 : index
    %c0_40 = arith.constant 0 : index
    %45 = vector.load %arg6[%c0_39, %c0_40] : memref<1x128xf32, #tpu.memory_space<vmem>>, vector<1x128xf32>
    %46 = vector.broadcast %45 : vector<1x128xf32> to vector<8x128xf32>
    %47 = arith.addf %44, %46 : vector<8x128xf32>
    %c0_41 = arith.constant 0 : index
    %c0_42 = arith.constant 0 : index
    %48 = vector.load %arg7[%c0_41, %c0_42] : memref<8x128xf32, #tpu.memory_space<vmem>>, vector<8x128xf32>
    tpu.vector_store %arg7[%c0_41, %c0_42], %47 {strides = array<i32>} : memref<8x128xf32, #tpu.memory_space<vmem>>, vector<8x128xf32>,
    return
  }
  func.func @transform_0(%arg0: i32, %arg1: memref<128xi32, #tpu.memory_space<smem>>) -> (i32, i32, i32, i32) {
    %c0_i32 = arith.constant 0 : i32
    %c0_i32_0 = arith.constant 0 : i32
    %c0_i32_1 = arith.constant 0 : i32
    %c0_i32_2 = arith.constant 0 : i32
    return %arg0, %c0_i32, %c0_i32_0, %c0_i32_1 : i32, i32, i32, i32
  }
  func.func @transform_1(%arg0: i32, %arg1: memref<128xi32, #tpu.memory_space<smem>>) -> (i32, i32) {
    %c0_i32 = arith.constant 0 : i32
    %c0_i32_0 = arith.constant 0 : i32
    return %arg0, %c0_i32 : i32, i32
  }
  func.func @transform_3(%arg0: i32, %arg1: memref<128xi32, #tpu.memory_space<smem>>) -> (i32, i32) {
    %c0_i32 = arith.constant 0 : i32
    %c0_i32_0 = arith.constant 0 : i32
    %c0_i32_1 = arith.constant 0 : i32
    return %c0_i32, %c0_i32_0 : i32, i32
  }
  func.func @transform_4(%arg0: i32, %arg1: memref<128xi32, #tpu.memory_space<smem>>) -> (i32, i32) {
    %c0_i32 = arith.constant 0 : i32
    %c0_i32_0 = arith.constant 0 : i32
    %c0_i32_1 = arith.constant 0 : i32
    return %c0_i32, %c0_i32_0 : i32, i32
  }
  func.func @transform_5(%arg0: i32, %arg1: memref<128xi32, #tpu.memory_space<smem>>) -> (i32, i32) {
    %c0_i32 = arith.constant 0 : i32
    %c0_i32_0 = arith.constant 0 : i32
    return %arg0, %c0_i32 : i32, i32
  }
}

</mosaic_0001>

<llo_original>
// kernel: pallas_classifier_forward.1
$region0: #{pallas_classifier_forward.1}
  #allocation0 [shape = 'u32[]', space=smem, size = 0x4, offset = 0x4, fixed_abs, tag = 'smem constant byte address 0x4 - core index']
  #allocation1 [shape = 'u32[144,128]{1,0:T(1,128)}', space=vmem, size = 0x12000, scoped, tag = 'internal scratch']
  #allocation2 [shape = 'f32[2,128,128]{2,1,0:T(8,128)}', space=vmem, size = 0x20000, scoped, tag = 'scratch operand']
  #allocation3 [shape = 's32[2]{0}', space=sflag, size = 0x8, scoped, tag = 'scratch operand']
  #allocation4 [shape = 'f32[8,128]{1,0:T(8,128)}', space=vmem, size = 0x1000, scoped, tag = 'scratch operand']
  #allocation5 [shape = 's32[1]{0}', space=sflag, size = 0x4, scoped, tag = 'scoped memory for pallas_classifier_forward.1']
  #allocation6 [shape = 'u8[512]{0}', space=smem, size = 0x200, scoped, tag = 'prefetched SMEM operand 0']
  #allocation7 [shape = 's32[]', space=sflag, size = 0x4, offset = 0, fixed_abs, tag = 'sflag constant byte address 0x0 - dummy sync flag']
  %s0 = inlined_call_operand.vmem [shape: s32[128], index: 0, kind: input, shape index: {}]
  %s1 = inlined_call_operand.vmem [shape: f32[1,1,8,128], index: 1, kind: input, shape index: {}]
  %s2 = inlined_call_operand.vmem [shape: f32[8,1], index: 2, kind: input, shape index: {}]
  %s3 = inlined_call_operand.vmem [shape: f32[64,128], index: 3, kind: input, shape index: {}]
  %s4 = inlined_call_operand.vmem [shape: f32[128,128], index: 4, kind: input, shape index: {}]
  %s5 = inlined_call_operand.vmem [shape: f32[1,128], index: 5, kind: input, shape index: {}]
  %s6 = inlined_call_operand.vmem [shape: f32[8,128], index: 6, kind: output, shape index: {}]
  %s7 = sld [smem:[#allocation0]]
  $region63: #{pallas_classifier_forward.1} parent=0
    _
  %s9 = ssub.s32 1, %s7
  %s10 = scalar_select 0, %s9, %s7
  %s11 = sshll.u32 %s0, 4
  %s12 = int_to_ptr.vmem [resolvable:$true] %s11
  %14 = dma.vmem_to_smem %s12, 16, [#allocation6], [#allocation5]
  %15 = dma.done [#allocation5], 16
  %16 = sfence
  // Predicated region
  $region2: #{pallas_classifier_forward.1} parent=0 // pred_check
    _
  $region3: #{pallas_classifier_forward.1} parent=0 // pred_check_branch
    %18 = sbr.rel (0) target = $region5
  $region4: #{pallas_classifier_forward.1} parent=0 // pred_region
    _
  $region5: #{pallas_classifier_forward.1} parent=0 // pred_fallthru
    _
  // Predicated region
  $region6: #{pallas_classifier_forward.1} parent=0 // pred_check
    _
  $region7: #{pallas_classifier_forward.1} parent=0 // pred_check_branch
    %20 = sbr.rel (0) target = $region9
  $region8: #{pallas_classifier_forward.1} parent=0 // pred_region
    _
  $region9: #{pallas_classifier_forward.1} parent=0 // pred_fallthru
    _
  // Predicated region
  $region10: #{pallas_classifier_forward.1} parent=0 // pred_check
    _
  $region11: #{pallas_classifier_forward.1} parent=0 // pred_check_branch
    %22 = sbr.rel (0) target = $region13
  $region12: #{pallas_classifier_forward.1} parent=0 // pred_region
    _
  $region13: #{pallas_classifier_forward.1} parent=0 // pred_fallthru
    _
  // Predicated region
  $region14: #{pallas_classifier_forward.1} parent=0 // pred_check
    _
  $region15: #{pallas_classifier_forward.1} parent=0 // pred_check_branch
    %24 = sbr.rel (0) target = $region17
  $region16: #{pallas_classifier_forward.1} parent=0 // pred_region
    _
  $region17: #{pallas_classifier_forward.1} parent=0 // pred_fallthru
    _
  %s25 = smul.u32 0, 128
  loop: start=0, step=1, limit=128
  $region18: #{pallas_classifier_forward.1} parent=0 // loop_pre_header
    _
  $region19: #{pallas_classifier_forward.1} parent=0 // loop_header
    %s27 = sphi 0, %s31
    %p28 = scmp.ge.s32.totalorder %s27, 128
  $region20: #{pallas_classifier_forward.1} parent=0 // loop_header_branch
    %30 = sbr.rel (%p28) target = $region24
  $region21: #{pallas_classifier_forward.1} parent=0 // loop_body
    %s32 = sadd.s32 %s25, %s27
    %s33 = sld [smem:[#allocation6 + %s32]]
    %s34 = scalar_lea.vmem %s3, %s33
    %s35 = scalar_lea.vmem [#allocation2], %s27
    %p37 = scmp.lt.u32.totalorder 1, 8
    %p38 = pneg %p37
    // Predicated region
    $region25: #{pallas_classifier_forward.1} parent=21 // pred_check
      _
    $region26: #{pallas_classifier_forward.1} parent=21 // pred_check_branch
      %40 = sbr.rel (%p37) target = $region28
    $region27: #{pallas_classifier_forward.1} parent=21 // pred_region
      %s56 = sand.u32 1, 7
      %p57 = scmp.eq.s32.totalorder %s56, 0
      %p58 = pneg %p57
      // Predicated region
      $region40: #{pallas_classifier_forward.1} parent=27 // pred_check
        _
      $region41: #{pallas_classifier_forward.1} parent=27 // pred_check_branch
        %60 = sbr.rel (%p57) target = $region43
      $region42: #{pallas_classifier_forward.1} parent=27 // pred_region
        %s61 = sand.u32 1, 7
        %s62 = ssub.s32 1, %s61
        %s63 = scalar_lea.vmem %s34, %s62
        %s64 = ssub.s32 1, %s61
        %s65 = scalar_lea.vmem %s35, %s64 [#allocation2]
        %s66 = sshll.u32 1, %s61
        %s67 = ssub.s32 %s66, 1
        loop: start=0, step=1, limit=1
        $region44: #{pallas_classifier_forward.1} parent=42 // loop_pre_header
          _
        $region45: #{pallas_classifier_forward.1} parent=42 // loop_header
          %s69 = sphi 0, %s73
          %p70 = scmp.ge.s32.totalorder %s69, 1
          %s74 = sphi %s63, %s63
          %s75 = sphi %s65, %s65
        $region46: #{pallas_classifier_forward.1} parent=42 // loop_header_branch
          %72 = sbr.rel (%p70) target = $region50
        $region47: #{pallas_classifier_forward.1} parent=42 // loop_body
          %v76 = vld [vmem:[%s74] sm:%s67]
          %77 = vst [vmem:[%s75] sm:%s67] %v76
        $region48: #{pallas_classifier_forward.1} parent=42 // loop_footer
          %s73 = sadd.s32 1, %s69
        $region49: #{pallas_classifier_forward.1} parent=42 // loop_footer_branch
          %68 = sbr.rel target = $region45
        $region50: #{pallas_classifier_forward.1} parent=42 // loop_exit
          _
      $region43: #{pallas_classifier_forward.1} parent=27 // pred_fallthru
        _
    $region28: #{pallas_classifier_forward.1} parent=21 // pred_fallthru
      _
    // Predicated region
    $region29: #{pallas_classifier_forward.1} parent=21 // pred_check
      %p41 = pneg %p37
    $region30: #{pallas_classifier_forward.1} parent=21 // pred_check_branch
      %43 = sbr.rel (%p41) target = $region32
    $region31: #{pallas_classifier_forward.1} parent=21 // pred_region
      %s44 = sshll.u32 1, 1
      %s45 = ssub.s32 %s44, 1
      loop: start=0, step=1, limit=1
      $region33: #{pallas_classifier_forward.1} parent=31 // loop_pre_header
        _
      $region34: #{pallas_classifier_forward.1} parent=31 // loop_header
        %s47 = sphi 0, %s51
        %p48 = scmp.ge.s32.totalorder %s47, 1
        %s52 = sphi %s34, %s34
        %s53 = sphi %s35, %s35
      $region35: #{pallas_classifier_forward.1} parent=31 // loop_header_branch
        %50 = sbr.rel (%p48) target = $region39
      $region36: #{pallas_classifier_forward.1} parent=31 // loop_body
        %v54 = vld [vmem:[%s52] sm:%s45]
        %55 = vst [vmem:[%s53] sm:%s45] %v54
      $region37: #{pallas_classifier_forward.1} parent=31 // loop_footer
        %s51 = sadd.s32 1, %s47
      $region38: #{pallas_classifier_forward.1} parent=31 // loop_footer_branch
        %46 = sbr.rel target = $region34
      $region39: #{pallas_classifier_forward.1} parent=31 // loop_exit
        _
    $region32: #{pallas_classifier_forward.1} parent=21 // pred_fallthru
      _
    // Predicated region
    $region51: #{pallas_classifier_forward.1} parent=21 // pred_check
      _
    $region52: #{pallas_classifier_forward.1} parent=21 // pred_check_branch
      %80 = sbr.rel (0) target = $region54
    $region53: #{pallas_classifier_forward.1} parent=21 // pred_region
      %81 = vsyncadd [#allocation3], 16
    $region54: #{pallas_classifier_forward.1} parent=21 // pred_fallthru
      _
  $region22: #{pallas_classifier_forward.1} parent=0 // loop_footer
    %s31 = sadd.s32 1, %s27
  $region23: #{pallas_classifier_forward.1} parent=0 // loop_footer_branch
    %26 = sbr.rel target = $region19
  $region24: #{pallas_classifier_forward.1} parent=0 // loop_exit
    _
  %82 = vst [vmem:[#allocation4] sm:$0xff] 0.0
  %s83 = smul.u32 128, 1
  %s84 = sshll.u32 %s83, 4
  %85 = dma.done [#allocation3], %s84
  %v86 = vld [vmem:[#allocation4] sm:$0xff]
  %v87 = vld [vmem:[%s1] sm:$0xff]
  %v88 = vld [vmem:[#allocation2] sm:$0xff]
  %v89 = vld [vmem:[#allocation2 + $0x8] sm:$0xff]
  %v90 = vld [vmem:[#allocation2 + $0x10] sm:$0xff]
  %v91 = vld [vmem:[#allocation2 + $0x18] sm:$0xff]
  %v92 = vld [vmem:[#allocation2 + $0x20] sm:$0xff]
  %v93 = vld [vmem:[#allocation2 + $0x28] sm:$0xff]
  %v94 = vld [vmem:[#allocation2 + $0x30] sm:$0xff]
  %v95 = vld [vmem:[#allocation2 + $0x38] sm:$0xff]
  %v96 = vld [vmem:[#allocation2 + $0x40] sm:$0xff]
  %v97 = vld [vmem:[#allocation2 + $0x48] sm:$0xff]
  %v98 = vld [vmem:[#allocation2 + $0x50] sm:$0xff]
  %v99 = vld [vmem:[#allocation2 + $0x58] sm:$0xff]
  %v100 = vld [vmem:[#allocation2 + $0x60] sm:$0xff]
  %v101 = vld [vmem:[#allocation2 + $0x68] sm:$0xff]
  %v102 = vld [vmem:[#allocation2 + $0x70] sm:$0xff]
  %v103 = vld [vmem:[#allocation2 + $0x78] sm:$0xff]
  %104 = vmatprep.subr.mxu0 0.0
  %105 = vmatpush1.msra.mxu0 %v103
  %106 = vmatprep.subr.mxu0 0.0
  %107 = vmatpush1.msra.mxu0 %v102
  %108 = vmatprep.subr.mxu0 0.0
  %109 = vmatpush1.msra.mxu0 %v101
  %110 = vmatprep.subr.mxu0 0.0
  %111 = vmatpush1.msra.mxu0 %v100
  %112 = vmatprep.subr.mxu0 0.0
  %113 = vmatpush1.msra.mxu0 %v99
  %114 = vmatprep.subr.mxu0 0.0
  %115 = vmatpush1.msra.mxu0 %v98
  %116 = vmatprep.subr.mxu0 0.0
  %117 = vmatpush1.msra.mxu0 %v97
  %118 = vmatprep.subr.mxu0 0.0
  %119 = vmatpush1.msra.mxu0 %v96
  %120 = vmatprep.subr.mxu0 0.0
  %121 = vmatpush1.msra.mxu0 %v95
  %122 = vmatprep.subr.mxu0 0.0
  %123 = vmatpush1.msra.mxu0 %v94
  %124 = vmatprep.subr.mxu0 0.0
  %125 = vmatpush1.msra.mxu0 %v93
  %126 = vmatprep.subr.mxu0 0.0
  %127 = vmatpush1.msra.mxu0 %v92
  %128 = vmatprep.subr.mxu0 0.0
  %129 = vmatpush1.msra.mxu0 %v91
  %130 = vmatprep.subr.mxu0 0.0
  %131 = vmatpush1.msra.mxu0 %v90
  %132 = vmatprep.subr.mxu0 0.0
  %133 = vmatpush1.msra.mxu0 %v89
  %134 = vmatprep.subr.mxu0 0.0
  %135 = vmatpush1.msra.mxu0 %v88
  %136 = vmatprep.subr.mxu0 0.0
  %137 = vmatpush2.msra.mxu0 0.0
  %138 = vmatprep.subr.mxu0 0.0
  %139 = vmatpush2.msra.mxu0 0.0
  %140 = vmatprep.subr.mxu0 0.0
  %141 = vmatpush2.msra.mxu0 0.0
  %142 = vmatprep.subr.mxu0 0.0
  %143 = vmatpush2.msra.mxu0 0.0
  %144 = vmatprep.subr.mxu0 0.0
  %145 = vmatpush2.msra.mxu0 0.0
  %146 = vmatprep.subr.mxu0 0.0
  %147 = vmatpush2.msra.mxu0 0.0
  %148 = vmatprep.subr.mxu0 0.0
  %149 = vmatpush2.msra.mxu0 0.0
  %150 = vmatprep.subr.mxu0 0.0
  %151 = vmatpush2.msra.mxu0 0.0
  %152 = vmatprep.subr.mxu0 0.0
  %153 = vmatpush2.msra.mxu0 0.0
  %154 = vmatprep.subr.mxu0 0.0
  %155 = vmatpush2.msra.mxu0 0.0
  %156 = vmatprep.subr.mxu0 0.0
  %157 = vmatpush2.msra.mxu0 0.0
  %158 = vmatprep.subr.mxu0 0.0
  %159 = vmatpush2.msra.mxu0 0.0
  %160 = vmatprep.subr.mxu0 0.0
  %161 = vmatpush2.msra.mxu0 0.0
  %162 = vmatprep.subr.mxu0 0.0
  %163 = vmatpush2.msra.mxu0 0.0
  %164 = vmatprep.subr.mxu0 0.0
  %165 = vmatpush2.msra.mxu0 0.0
  %166 = vmatprep.subr.mxu0 0.0
  %167 = vmatpush2.msra.mxu0 0.0
  %168 = vmatprep.mubr.f32.mxu0 0.0
  %169 = vmatmul.mubr.f32.gmra.mxu0 %v87
  %v170 = vpop.f32.mrf.mxu0
  %v171 = vadd.f32 0.0, %v170
  %v172 = vpop.f32.mrf.mxu0
  %173 = vdwg.mxu0
  %v174 = vadd.f32 %v86, %v171
  %175 = vst [vmem:[#allocation4] sm:$0xff] %v174
  %v176 = vld [vmem:[#allocation4] sm:$0xff]
  %v177 = vld [vmem:[%s2] sm:$0xff]
  %179 = vset.pattern.permute.xlu0 0
  %180 = vperm.xlu0 %179, %v177
  %v181 = vpop.permute.xlu0 %180
  %v183 = vmul.f32 %v176, %v181
  %v184 = vld [vmem:[%s4] sm:$0xff]
  %v185 = vld [vmem:[%s4 + $0x8] sm:$0xff]
  %v186 = vld [vmem:[%s4 + $0x10] sm:$0xff]
  %v187 = vld [vmem:[%s4 + $0x18] sm:$0xff]
  %v188 = vld [vmem:[%s4 + $0x20] sm:$0xff]
  %v189 = vld [vmem:[%s4 + $0x28] sm:$0xff]
  %v190 = vld [vmem:[%s4 + $0x30] sm:$0xff]
  %v191 = vld [vmem:[%s4 + $0x38] sm:$0xff]
  %v192 = vld [vmem:[%s4 + $0x40] sm:$0xff]
  %v193 = vld [vmem:[%s4 + $0x48] sm:$0xff]
  %v194 = vld [vmem:[%s4 + $0x50] sm:$0xff]
  %v195 = vld [vmem:[%s4 + $0x58] sm:$0xff]
  %v196 = vld [vmem:[%s4 + $0x60] sm:$0xff]
  %v197 = vld [vmem:[%s4 + $0x68] sm:$0xff]
  %v198 = vld [vmem:[%s4 + $0x70] sm:$0xff]
  %v199 = vld [vmem:[%s4 + $0x78] sm:$0xff]
  %v200 = vld [vmem:[%s5] sm:$0x1]
  %v202 = vlaneseq
  %v203 = vshrl.u32 %v202, 7
  %v204 = vsub.s32 0, %v203
  %v205 = vrot.slane %v200, %v204
  %207 = vmatprep.subr.mxu0 0.0
  %208 = vmatpush1.msra.mxu0 %v199
  %209 = vmatprep.subr.mxu0 0.0
  %210 = vmatpush1.msra.mxu0 %v198
  %211 = vmatprep.subr.mxu0 0.0
  %212 = vmatpush1.msra.mxu0 %v197
  %213 = vmatprep.subr.mxu0 0.0
  %214 = vmatpush1.msra.mxu0 %v196
  %215 = vmatprep.subr.mxu0 0.0
  %216 = vmatpush1.msra.mxu0 %v195
  %217 = vmatprep.subr.mxu0 0.0
  %218 = vmatpush1.msra.mxu0 %v194
  %219 = vmatprep.subr.mxu0 0.0
  %220 = vmatpush1.msra.mxu0 %v193
  %221 = vmatprep.subr.mxu0 0.0
  %222 = vmatpush1.msra.mxu0 %v192
  %223 = vmatprep.subr.mxu0 0.0
  %224 = vmatpush1.msra.mxu0 %v191
  %225 = vmatprep.subr.mxu0 0.0
  %226 = vmatpush1.msra.mxu0 %v190
  %227 = vmatprep.subr.mxu0 0.0
  %228 = vmatpush1.msra.mxu0 %v189
  %229 = vmatprep.subr.mxu0 0.0
  %230 = vmatpush1.msra.mxu0 %v188
  %231 = vmatprep.subr.mxu0 0.0
  %232 = vmatpush1.msra.mxu0 %v187
  %233 = vmatprep.subr.mxu0 0.0
  %234 = vmatpush1.msra.mxu0 %v186
  %235 = vmatprep.subr.mxu0 0.0
  %236 = vmatpush1.msra.mxu0 %v185
  %237 = vmatprep.subr.mxu0 0.0
  %238 = vmatpush1.msra.mxu0 %v184
  %239 = vmatprep.subr.mxu0 0.0
  %240 = vmatpush2.msra.mxu0 0.0
  %241 = vmatprep.subr.mxu0 0.0
  %242 = vmatpush2.msra.mxu0 0.0
  %243 = vmatprep.subr.mxu0 0.0
  %244 = vmatpush2.msra.mxu0 0.0
  %245 = vmatprep.subr.mxu0 0.0
  %246 = vmatpush2.msra.mxu0 0.0
  %247 = vmatprep.subr.mxu0 0.0
  %248 = vmatpush2.msra.mxu0 0.0
  %249 = vmatprep.subr.mxu0 0.0
  %250 = vmatpush2.msra.mxu0 0.0
  %251 = vmatprep.subr.mxu0 0.0
  %252 = vmatpush2.msra.mxu0 0.0
  %253 = vmatprep.subr.mxu0 0.0
  %254 = vmatpush2.msra.mxu0 0.0
  %255 = vmatprep.subr.mxu0 0.0
  %256 = vmatpush2.msra.mxu0 0.0
  %257 = vmatprep.subr.mxu0 0.0
  %258 = vmatpush2.msra.mxu0 0.0
  %259 = vmatprep.subr.mxu0 0.0
  %260 = vmatpush2.msra.mxu0 0.0
  %261 = vmatprep.subr.mxu0 0.0
  %262 = vmatpush2.msra.mxu0 0.0
  %263 = vmatprep.subr.mxu0 0.0
  %264 = vmatpush2.msra.mxu0 0.0
  %265 = vmatprep.subr.mxu0 0.0
  %266 = vmatpush2.msra.mxu0 0.0
  %267 = vmatprep.subr.mxu0 0.0
  %268 = vmatpush2.msra.mxu0 0.0
  %269 = vmatprep.subr.mxu0 0.0
  %270 = vmatpush2.msra.mxu0 0.0
  %271 = vmatprep.mubr.f32.mxu0 0.0
  %272 = vmatmul.mubr.f32.gmra.mxu0 %v183
  %v273 = vpop.f32.mrf.mxu0
  %v274 = vadd.f32 %v205, %v273
  %v275 = vpop.f32.mrf.mxu0
  %276 = vdwg.mxu0
  %277 = vst [vmem:[%s6] sm:$0xff] %v274
  // Predicated region
  $region55: #{pallas_classifier_forward.1} parent=0 // pred_check
    _
  $region56: #{pallas_classifier_forward.1} parent=0 // pred_check_branch
    %279 = sbr.rel (0) target = $region58
  $region57: #{pallas_classifier_forward.1} parent=0 // pred_region
    _
  $region58: #{pallas_classifier_forward.1} parent=0 // pred_fallthru
    _
  // Predicated region
  $region59: #{pallas_classifier_forward.1} parent=0 // pred_check
    _
  $region60: #{pallas_classifier_forward.1} parent=0 // pred_check_branch
    %281 = sbr.rel (0) target = $region62
  $region61: #{pallas_classifier_forward.1} parent=0 // pred_region
    _
  $region62: #{pallas_classifier_forward.1} parent=0 // pred_fallthru
    _
  %282 = vsyncmov [#allocation3]
  %s283 = vpop.sfrf %282
  %p284 = scmp.eq.s32.totalorder %s283, 0
  %p285 = pneg %p284
  %287 = shalt.err (%p285)
  %s288 = scalar_lea.sflag [#allocation3], 1
  %289 = vsyncmov %s288
  %s290 = vpop.sfrf %289
  %p291 = scmp.eq.s32.totalorder %s290, 0
  %p292 = pneg %p291
  %294 = shalt.err (%p292)

</llo_original>
